<compile_context>
chip_gen: v6e
topology: v6e:2x2x1
jax: 0.10.0
libtpu: 0.0.40
codegen_flags: <defaults>
</compile_context>

<pallas_src>
import jax
import jax.numpy as jnp
from jax.experimental import pallas as pl
from jax.experimental.pallas import tpu as pltpu


def _round_up(x, m):
    return ((x + m - 1) // m) * m


def _sigmoid_f32(x):
    # exp on the EUP, exact reciprocal (stays within 1e-5 tolerance).
    return pl.reciprocal(1.0 + jnp.exp(-x), approx=False)


def _softmax_lastdim(z):
    # General-C path: exp + multiply-by-reciprocal (no VALU divide).
    m = jnp.max(z, axis=-1, keepdims=True)
    e = jnp.exp(z - m)
    return e * pl.reciprocal(jnp.sum(e, axis=-1, keepdims=True), approx=False)


def late_fusion_kernel(xa_ref, x0_ref, x1_ref, wa_ref, w0_ref, w1_ref, b_ref,
                       o_ref):
    f32 = jnp.float32
    # Three small MXU matmuls with f32 accumulation; biases come from the
    # tiny resident (3, C) VMEM ref (no ones-column / fused weight slab).
    la = jnp.dot(xa_ref[...], wa_ref[...], preferred_element_type=f32)
    l0 = jnp.dot(x0_ref[...], w0_ref[...], preferred_element_type=f32)
    l1 = jnp.dot(x1_ref[...], w1_ref[...], preferred_element_type=f32)
    la = la + b_ref[0:1, :].astype(f32)
    l0 = l0 + b_ref[1:2, :].astype(f32)
    l1 = l1 + b_ref[2:3, :].astype(f32)

    tb, C = o_ref.shape
    third = jnp.float32(1.0 / 3.0)

    if C == 2:
        # softmax over 2 classes == [sigmoid(a-b), 1 - sigmoid(a-b)]:
        # pure VPU subtracts + 3 EUP exp/reciprocal chains per row, and the
        # averaged complement identity is exact.
        da = la[:, 0:1] - la[:, 1:2]
        d0 = l0[:, 0:1] - l0[:, 1:2]
        d1 = l1[:, 0:1] - l1[:, 1:2]
        p0 = (_sigmoid_f32(da) + _sigmoid_f32(d0) + _sigmoid_f32(d1)) * third
        # Single full-width construction (no concatenates): lane-mask select.
        col = jax.lax.broadcasted_iota(jnp.int32, (tb, C), 1)
        fused = jnp.where(col == 0, p0, 1.0 - p0)
    else:
        fused = (_softmax_lastdim(la) + _softmax_lastdim(l0) +
                 _softmax_lastdim(l1)) * third

    o_ref[...] = fused.astype(o_ref.dtype)


def _pick_tb(batch, cap=1024):
    """Balanced batch tiles: even step count >= 2 when B > 8 (v7x megacore),
    <= `cap` rows per tile, rows per tile a multiple of 8 (sublane tile)."""
    steps = max(1, pl.cdiv(batch, cap))
    if batch > 8:
        steps = max(steps, 2)
        if steps % 2:
            steps += 1
    return _round_up(pl.cdiv(batch, steps), 8)


def late_fusion(x_audio, x_cam0, x_cam1, params, *, tb=None):
    """x_audio: (B, Da), x_cam0/x_cam1: (B, Dv). Returns fused probs (B, C)."""
    B, Da = x_audio.shape
    _, Dv0 = x_cam0.shape
    _, Dv1 = x_cam1.shape
    wa, ba, w0, b0, w1, b1 = params
    C = wa.shape[1]

    # Only wrapper-side prep: stack the three (1, C) biases into one tiny
    # (3, C) array (a few bytes; activations and weights pass straight through).
    b_cat = jnp.concatenate(
        [jnp.reshape(ba, (1, C)), jnp.reshape(b0, (1, C)),
         jnp.reshape(b1, (1, C))], axis=0).astype(jnp.float32)

    if tb is None:
        tb = _pick_tb(B)
    tb = max(8, _round_up(tb, 8))
    # Ragged final tile (B % tb != 0) is handled by Pallas read-padding /
    # write-masking; no wrapper-side row padding pass.
    grid = (pl.cdiv(B, tb),)

    itemsize = jnp.dtype(x_audio.dtype).itemsize
    cost = pl.CostEstimate(
        flops=2 * B * C * (Da + Dv0 + Dv1),
        transcendentals=(3 * B) if C == 2 else (3 * B * C),
        bytes_accessed=(itemsize * B * (Da + Dv0 + Dv1)   # activations in
                        + 4 * C * (Da + Dv0 + Dv1 + 3)    # weights + biases
                        + 4 * B * C),                     # probs out
    )

    return pl.pallas_call(
        late_fusion_kernel,
        out_shape=jax.ShapeDtypeStruct((B, C), jnp.float32),
        grid_spec=pl.GridSpec(
            grid=grid,
            in_specs=[
                pl.BlockSpec((tb, Da), lambda i: (i, 0)),    # audio features
                pl.BlockSpec((tb, Dv0), lambda i: (i, 0)),   # cam0 features
                pl.BlockSpec((tb, Dv1), lambda i: (i, 0)),   # cam1 features
                pl.BlockSpec((Da, C), lambda i: (0, 0)),     # resident weights
                pl.BlockSpec((Dv0, C), lambda i: (0, 0)),
                pl.BlockSpec((Dv1, C), lambda i: (0, 0)),
                pl.BlockSpec((3, C), lambda i: (0, 0)),      # stacked biases
            ],
            out_specs=pl.BlockSpec((tb, C), lambda i: (i, 0)),
        ),
        compiler_params=pltpu.CompilerParams(
            dimension_semantics=("parallel",)),
        cost_estimate=cost,
    )(x_audio, x_cam0, x_cam1, wa, w0, w1, b_cat)


def _reference(x_audio, x_cam0, x_cam1, params):
    wa, ba, w0, b0, w1, b1 = params
    la = x_audio @ wa + ba
    l0 = x_cam0 @ w0 + b0
    l1 = x_cam1 @ w1 + b1
    sm = lambda z: jax.nn.softmax(z, axis=-1)
    return (sm(la) + sm(l0) + sm(l1)) / 3.0


if __name__ == "__main__":
    B, Da, Dv, C = 8, 32, 32, 2   # class_num=2 as in the module default

    key = jax.random.PRNGKey(0)
    k_xa, k_x0, k_x1, k_wa, k_w0, k_w1 = jax.random.split(key, 6)

    x_audio = jax.random.normal(k_xa, (B, Da), dtype=jnp.float32)
    x_cam0 = jax.random.normal(k_x0, (B, Dv), dtype=jnp.float32)
    x_cam1 = jax.random.normal(k_x1, (B, Dv), dtype=jnp.float32)

    # Deterministic synthetic backbone classifier-head parameters.
    wa = jax.random.normal(k_wa, (Da, C), dtype=jnp.float32) * 0.1
    w0 = jax.random.normal(k_w0, (Dv, C), dtype=jnp.float32) * 0.1
    w1 = jax.random.normal(k_w1, (Dv, C), dtype=jnp.float32) * 0.1
    ba = jnp.zeros((1, C), dtype=jnp.float32)
    b0 = jnp.zeros((1, C), dtype=jnp.float32)
    b1 = jnp.zeros((1, C), dtype=jnp.float32)
    params = (wa, ba, w0, b0, w1, b1)

    # TODO(synk): modality dropout ("audio"/"video_camX" missing from inputs)
    # is Python-level control flow in the wrapper; this kernel assumes all
    # three modalities are present.
    out = late_fusion(x_audio, x_cam0, x_cam1, params)
    out = jax.block_until_ready(out)

    ref = _reference(x_audio, x_cam0, x_cam1, params)
    assert out.shape == (B, C)
    assert jnp.allclose(out, ref, atol=1e-5, rtol=1e-5), "mismatch vs reference"

    print("KERNEL_OK")
</pallas_src>

<mosaic_0001>
module attributes {stable_mosaic.version = 11 : i64} {
  func.func @late_fusion_kernel(%arg0: i32, %arg1: memref<8x32xf32, #tpu.memory_space<vmem>>, %arg2: memref<8x32xf32, #tpu.memory_space<vmem>>, %arg3: memref<8x32xf32, #tpu.memory_space<vmem>>, %arg4: memref<32x2xf32, #tpu.memory_space<vmem>>, %arg5: memref<32x2xf32, #tpu.memory_space<vmem>>, %arg6: memref<32x2xf32, #tpu.memory_space<vmem>>, %arg7: memref<3x2xf32, #tpu.memory_space<vmem>>, %arg8: memref<8x2xf32, #tpu.memory_space<vmem>>) attributes {dimension_semantics = [#tpu.dimension_semantics<parallel>], iteration_bounds = array<i64: 1>, scalar_prefetch = 0 : i64, scratch_operands = 0 : i64, tpu.core_type = #tpu.core_type<tc>, window_params = [{transform_indices = @transform_0, window_bounds = array<i64: 8, 32>}, {transform_indices = @transform_1, window_bounds = array<i64: 8, 32>}, {transform_indices = @transform_2, window_bounds = array<i64: 8, 32>}, {pipeline_mode = #tpu.pipeline_mode<synchronous>, transform_indices = @transform_3, window_bounds = array<i64: 32, 2>}, {pipeline_mode = #tpu.pipeline_mode<synchronous>, transform_indices = @transform_4, window_bounds = array<i64: 32, 2>}, {pipeline_mode = #tpu.pipeline_mode<synchronous>, transform_indices = @transform_5, window_bounds = array<i64: 32, 2>}, {pipeline_mode = #tpu.pipeline_mode<synchronous>, transform_indices = @transform_6, window_bounds = array<i64: 3, 2>}, {transform_indices = @transform_7, window_bounds = array<i64: 8, 2>}]} {
    %c0 = arith.constant 0 : index
    %c0_0 = arith.constant 0 : index
    %0 = vector.load %arg1[%c0, %c0_0] : memref<8x32xf32, #tpu.memory_space<vmem>>, vector<8x32xf32>
    %c0_1 = arith.constant 0 : index
    %c0_2 = arith.constant 0 : index
    %1 = vector.load %arg4[%c0_1, %c0_2] : memref<32x2xf32, #tpu.memory_space<vmem>>, vector<32x2xf32>
    %cst = arith.constant dense<0.000000e+00> : vector<8x2xf32>
    %2 = tpu.matmul %0, %1, %cst {dimension_numbers = #tpu.dot_dimension_numbers<[1], [0], [0], [1], [0, 0, 1, 1], [], []>} : vector<8x32xf32>, vector<32x2xf32>, vector<8x2xf32> -> vector<8x2xf32>
    %c0_3 = arith.constant 0 : index
    %c0_4 = arith.constant 0 : index
    %3 = vector.load %arg2[%c0_3, %c0_4] : memref<8x32xf32, #tpu.memory_space<vmem>>, vector<8x32xf32>
    %c0_5 = arith.constant 0 : index
    %c0_6 = arith.constant 0 : index
    %4 = vector.load %arg5[%c0_5, %c0_6] : memref<32x2xf32, #tpu.memory_space<vmem>>, vector<32x2xf32>
    %cst_7 = arith.constant dense<0.000000e+00> : vector<8x2xf32>
    %5 = tpu.matmul %3, %4, %cst_7 {dimension_numbers = #tpu.dot_dimension_numbers<[1], [0], [0], [1], [0, 0, 1, 1], [], []>} : vector<8x32xf32>, vector<32x2xf32>, vector<8x2xf32> -> vector<8x2xf32>
    %c0_8 = arith.constant 0 : index
    %c0_9 = arith.constant 0 : index
    %6 = vector.load %arg3[%c0_8, %c0_9] : memref<8x32xf32, #tpu.memory_space<vmem>>, vector<8x32xf32>
    %c0_10 = arith.constant 0 : index
    %c0_11 = arith.constant 0 : index
    %7 = vector.load %arg6[%c0_10, %c0_11] : memref<32x2xf32, #tpu.memory_space<vmem>>, vector<32x2xf32>
    %cst_12 = arith.constant dense<0.000000e+00> : vector<8x2xf32>
    %8 = tpu.matmul %6, %7, %cst_12 {dimension_numbers = #tpu.dot_dimension_numbers<[1], [0], [0], [1], [0, 0, 1, 1], [], []>} : vector<8x32xf32>, vector<32x2xf32>, vector<8x2xf32> -> vector<8x2xf32>
    %c0_13 = arith.constant 0 : index
    %c0_14 = arith.constant 0 : index
    %9 = vector.load %arg7[%c0_13, %c0_14] : memref<3x2xf32, #tpu.memory_space<vmem>>, vector<1x2xf32>
    %10 = vector.broadcast %9 : vector<1x2xf32> to vector<8x2xf32>
    %11 = arith.addf %2, %10 : vector<8x2xf32>
    %c1 = arith.constant 1 : index
    %c0_15 = arith.constant 0 : index
    %12 = vector.load %arg7[%c1, %c0_15] : memref<3x2xf32, #tpu.memory_space<vmem>>, vector<1x2xf32>
    %13 = vector.broadcast %12 : vector<1x2xf32> to vector<8x2xf32>
    %14 = arith.addf %5, %13 : vector<8x2xf32>
    %c2 = arith.constant 2 : index
    %c0_16 = arith.constant 0 : index
    %15 = vector.load %arg7[%c2, %c0_16] : memref<3x2xf32, #tpu.memory_space<vmem>>, vector<1x2xf32>
    %16 = vector.broadcast %15 : vector<1x2xf32> to vector<8x2xf32>
    %17 = arith.addf %8, %16 : vector<8x2xf32>
    %18 = vector.extract_strided_slice %11 {offsets = [0, 0], sizes = [8, 1], strides = [1, 1]} : vector<8x2xf32> to vector<8x1xf32>
    %19 = vector.extract_strided_slice %11 {offsets = [0, 1], sizes = [8, 1], strides = [1, 1]} : vector<8x2xf32> to vector<8x1xf32>
    %20 = arith.subf %18, %19 : vector<8x1xf32>
    %21 = vector.extract_strided_slice %14 {offsets = [0, 0], sizes = [8, 1], strides = [1, 1]} : vector<8x2xf32> to vector<8x1xf32>
    %22 = vector.extract_strided_slice %14 {offsets = [0, 1], sizes = [8, 1], strides = [1, 1]} : vector<8x2xf32> to vector<8x1xf32>
    %23 = arith.subf %21, %22 : vector<8x1xf32>
    %24 = vector.extract_strided_slice %17 {offsets = [0, 0], sizes = [8, 1], strides = [1, 1]} : vector<8x2xf32> to vector<8x1xf32>
    %25 = vector.extract_strided_slice %17 {offsets = [0, 1], sizes = [8, 1], strides = [1, 1]} : vector<8x2xf32> to vector<8x1xf32>
    %26 = arith.subf %24, %25 : vector<8x1xf32>
    %cst_17 = arith.constant 0.000000e+00 : f32
    %27 = vector.broadcast %cst_17 : f32 to vector<8x1xf32>
    %28 = arith.subf %27, %20 : vector<8x1xf32>
    %29 = math.exp %28 : vector<8x1xf32>
    %cst_18 = arith.constant 1.000000e+00 : f32
    %30 = vector.broadcast %cst_18 : f32 to vector<8x1xf32>
    %31 = arith.addf %30, %29 : vector<8x1xf32>
    %32 = tpu.reciprocal %31 : vector<8x1xf32> -> vector<8x1xf32>
    %cst_19 = arith.constant 0.000000e+00 : f32
    %33 = vector.broadcast %cst_19 : f32 to vector<8x1xf32>
    %34 = arith.subf %33, %23 : vector<8x1xf32>
    %35 = math.exp %34 : vector<8x1xf32>
    %cst_20 = arith.constant 1.000000e+00 : f32
    %36 = vector.broadcast %cst_20 : f32 to vector<8x1xf32>
    %37 = arith.addf %36, %35 : vector<8x1xf32>
    %38 = tpu.reciprocal %37 : vector<8x1xf32> -> vector<8x1xf32>
    %39 = arith.addf %32, %38 : vector<8x1xf32>
    %cst_21 = arith.constant 0.000000e+00 : f32
    %40 = vector.broadcast %cst_21 : f32 to vector<8x1xf32>
    %41 = arith.subf %40, %26 : vector<8x1xf32>
    %42 = math.exp %41 : vector<8x1xf32>
    %cst_22 = arith.constant 1.000000e+00 : f32
    %43 = vector.broadcast %cst_22 : f32 to vector<8x1xf32>
    %44 = arith.addf %43, %42 : vector<8x1xf32>
    %45 = tpu.reciprocal %44 : vector<8x1xf32> -> vector<8x1xf32>
    %46 = arith.addf %39, %45 : vector<8x1xf32>
    %cst_23 = arith.constant 0.333333343 : f32
    %47 = vector.broadcast %cst_23 : f32 to vector<8x1xf32>
    %48 = arith.mulf %46, %47 : vector<8x1xf32>
    %49 = tpu.iota {dimensions = array<i32: 1>} : vector<8x2xi32>
    %c0_i32 = arith.constant 0 : i32
    %50 = vector.broadcast %c0_i32 : i32 to vector<8x2xi32>
    %51 = arith.cmpi eq, %49, %50 : vector<8x2xi32>
    %cst_24 = arith.constant 1.000000e+00 : f32
    %52 = vector.broadcast %cst_24 : f32 to vector<8x1xf32>
    %53 = arith.subf %52, %48 : vector<8x1xf32>
    %54 = vector.shape_cast %48 : vector<8x1xf32> to vector<8x1xf32>
    %55 = vector.broadcast %54 : vector<8x1xf32> to vector<8x2xf32>
    %56 = vector.shape_cast %53 : vector<8x1xf32> to vector<8x1xf32>
    %57 = vector.broadcast %56 : vector<8x1xf32> to vector<8x2xf32>
    %58 = arith.select %51, %55, %57 : vector<8x2xi1>, vector<8x2xf32>
    %c0_25 = arith.constant 0 : index
    %c0_26 = arith.constant 0 : index
    %59 = vector.load %arg8[%c0_25, %c0_26] : memref<8x2xf32, #tpu.memory_space<vmem>>, vector<8x2xf32>
    tpu.vector_store %arg8[%c0_25, %c0_26], %58 {strides = array<i32>} : memref<8x2xf32, #tpu.memory_space<vmem>>, vector<8x2xf32>,
    return
  }
  func.func @transform_0(%arg0: i32) -> (i32, i32) {
    %c0_i32 = arith.constant 0 : i32
    %c0_i32_0 = arith.constant 0 : i32
    return %arg0, %c0_i32 : i32, i32
  }
  func.func @transform_1(%arg0: i32) -> (i32, i32) {
    %c0_i32 = arith.constant 0 : i32
    %c0_i32_0 = arith.constant 0 : i32
    return %arg0, %c0_i32 : i32, i32
  }
  func.func @transform_2(%arg0: i32) -> (i32, i32) {
    %c0_i32 = arith.constant 0 : i32
    %c0_i32_0 = arith.constant 0 : i32
    return %arg0, %c0_i32 : i32, i32
  }
  func.func @transform_3(%arg0: i32) -> (i32, i32) {
    %c0_i32 = arith.constant 0 : i32
    %c0_i32_0 = arith.constant 0 : i32
    %c0_i32_1 = arith.constant 0 : i32
    return %c0_i32, %c0_i32_0 : i32, i32
  }
  func.func @transform_4(%arg0: i32) -> (i32, i32) {
    %c0_i32 = arith.constant 0 : i32
    %c0_i32_0 = arith.constant 0 : i32
    %c0_i32_1 = arith.constant 0 : i32
    return %c0_i32, %c0_i32_0 : i32, i32
  }
  func.func @transform_5(%arg0: i32) -> (i32, i32) {
    %c0_i32 = arith.constant 0 : i32
    %c0_i32_0 = arith.constant 0 : i32
    %c0_i32_1 = arith.constant 0 : i32
    return %c0_i32, %c0_i32_0 : i32, i32
  }
  func.func @transform_6(%arg0: i32) -> (i32, i32) {
    %c0_i32 = arith.constant 0 : i32
    %c0_i32_0 = arith.constant 0 : i32
    %c0_i32_1 = arith.constant 0 : i32
    return %c0_i32, %c0_i32_0 : i32, i32
  }
  func.func @transform_7(%arg0: i32) -> (i32, i32) {
    %c0_i32 = arith.constant 0 : i32
    %c0_i32_0 = arith.constant 0 : i32
    return %arg0, %c0_i32 : i32, i32
  }
}

</mosaic_0001>

<llo_original>
// kernel: tpu_custom_call.1
$region0: #{tpu_custom_call.1}
  #allocation0 [shape = 'u32[]', space=smem, size = 0x4, offset = 0x4, fixed_abs, tag = 'smem constant byte address 0x4 - core index']
  #allocation1 [shape = 'u32[144,128]{1,0:T(1,128)}', space=vmem, size = 0x12000, scoped, tag = 'internal scratch']
  %s0 = inlined_call_operand.vmem [shape: f32[8,32], index: 0, kind: input, shape index: {}]
  %s1 = inlined_call_operand.vmem [shape: f32[8,32], index: 1, kind: input, shape index: {}]
  %s2 = inlined_call_operand.vmem [shape: f32[8,32], index: 2, kind: input, shape index: {}]
  %s3 = inlined_call_operand.vmem [shape: f32[32,2], index: 3, kind: input, shape index: {}]
  %s4 = inlined_call_operand.vmem [shape: f32[32,2], index: 4, kind: input, shape index: {}]
  %s5 = inlined_call_operand.vmem [shape: f32[32,2], index: 5, kind: input, shape index: {}]
  %s6 = inlined_call_operand.vmem [shape: f32[3,2], index: 6, kind: input, shape index: {}]
  %s7 = inlined_call_operand.vmem [shape: f32[8,2], index: 7, kind: output, shape index: {}]
  %s8 = sld [smem:[#allocation0]]
  $region38: #{tpu_custom_call.1} parent=0
    _
  %s10 = ssub.s32 1, %s8
  %s11 = scalar_select 0, %s10, %s8
  // Predicated region
  $region2: #{tpu_custom_call.1} parent=0 // pred_check
    _
  $region3: #{tpu_custom_call.1} parent=0 // pred_check_branch
    %13 = sbr.rel (0) target = $region5
  $region4: #{tpu_custom_call.1} parent=0 // pred_region
    _
  $region5: #{tpu_custom_call.1} parent=0 // pred_fallthru
    _
  // Predicated region
  $region6: #{tpu_custom_call.1} parent=0 // pred_check
    _
  $region7: #{tpu_custom_call.1} parent=0 // pred_check_branch
    %15 = sbr.rel (0) target = $region9
  $region8: #{tpu_custom_call.1} parent=0 // pred_region
    _
  $region9: #{tpu_custom_call.1} parent=0 // pred_fallthru
    _
  // Predicated region
  $region10: #{tpu_custom_call.1} parent=0 // pred_check
    _
  $region11: #{tpu_custom_call.1} parent=0 // pred_check_branch
    %17 = sbr.rel (0) target = $region13
  $region12: #{tpu_custom_call.1} parent=0 // pred_region
    _
  $region13: #{tpu_custom_call.1} parent=0 // pred_fallthru
    _
  // Predicated region
  $region14: #{tpu_custom_call.1} parent=0 // pred_check
    _
  $region15: #{tpu_custom_call.1} parent=0 // pred_check_branch
    %19 = sbr.rel (0) target = $region17
  $region16: #{tpu_custom_call.1} parent=0 // pred_region
    _
  $region17: #{tpu_custom_call.1} parent=0 // pred_fallthru
    _
  // Predicated region
  $region18: #{tpu_custom_call.1} parent=0 // pred_check
    _
  $region19: #{tpu_custom_call.1} parent=0 // pred_check_branch
    %21 = sbr.rel (0) target = $region21
  $region20: #{tpu_custom_call.1} parent=0 // pred_region
    _
  $region21: #{tpu_custom_call.1} parent=0 // pred_fallthru
    _
  // Predicated region
  $region22: #{tpu_custom_call.1} parent=0 // pred_check
    _
  $region23: #{tpu_custom_call.1} parent=0 // pred_check_branch
    %23 = sbr.rel (0) target = $region25
  $region24: #{tpu_custom_call.1} parent=0 // pred_region
    _
  $region25: #{tpu_custom_call.1} parent=0 // pred_fallthru
    _
  // Predicated region
  $region26: #{tpu_custom_call.1} parent=0 // pred_check
    _
  $region27: #{tpu_custom_call.1} parent=0 // pred_check_branch
    %25 = sbr.rel (0) target = $region29
  $region28: #{tpu_custom_call.1} parent=0 // pred_region
    _
  $region29: #{tpu_custom_call.1} parent=0 // pred_fallthru
    _
  %v26 = vld [vmem:[%s0] sm:$0xff]
  %v27 = vld [vmem:[%s3] sm:$0xff]
  %v28 = vld [vmem:[%s3 + $0x8] sm:$0xff]
  %v29 = vld [vmem:[%s3 + $0x10] sm:$0xff]
  %v30 = vld [vmem:[%s3 + $0x18] sm:$0xff]
  %v31 = vld [vmem:[%s1] sm:$0xff]
  %v32 = vld [vmem:[%s4] sm:$0xff]
  %v33 = vld [vmem:[%s4 + $0x8] sm:$0xff]
  %v34 = vld [vmem:[%s4 + $0x10] sm:$0xff]
  %v35 = vld [vmem:[%s4 + $0x18] sm:$0xff]
  %v36 = vld [vmem:[%s2] sm:$0xff]
  %v37 = vld [vmem:[%s5] sm:$0xff]
  %v38 = vld [vmem:[%s5 + $0x8] sm:$0xff]
  %v39 = vld [vmem:[%s5 + $0x10] sm:$0xff]
  %v40 = vld [vmem:[%s5 + $0x18] sm:$0xff]
  %v41 = vld [vmem:[%s6] sm:$0x1]
  %v42 = vlaneseq
  %v43 = vshrl.u32 %v42, 7
  %v44 = vsub.s32 0, %v43
  %v45 = vrot.slane %v41, %v44
  %vm46 = vcmask 261120
  %v48 = vsel %vm46, %v26, 0
  %50 = vmatprep.subr.mxu0 0.0
  %51 = vmatpush1.msra.mxu0 0.0
  %52 = vmatprep.subr.mxu0 0.0
  %53 = vmatpush1.msra.mxu0 0.0
  %54 = vmatprep.subr.mxu0 0.0
  %55 = vmatpush1.msra.mxu0 0.0
  %56 = vmatprep.subr.mxu0 0.0
  %57 = vmatpush1.msra.mxu0 0.0
  %58 = vmatprep.subr.mxu0 0.0
  %59 = vmatpush1.msra.mxu0 0.0
  %60 = vmatprep.subr.mxu0 0.0
  %61 = vmatpush1.msra.mxu0 0.0
  %62 = vmatprep.subr.mxu0 0.0
  %63 = vmatpush1.msra.mxu0 0.0
  %64 = vmatprep.subr.mxu0 0.0
  %65 = vmatpush1.msra.mxu0 0.0
  %66 = vmatprep.subr.mxu0 0.0
  %67 = vmatpush1.msra.mxu0 0.0
  %68 = vmatprep.subr.mxu0 0.0
  %69 = vmatpush1.msra.mxu0 0.0
  %70 = vmatprep.subr.mxu0 0.0
  %71 = vmatpush1.msra.mxu0 0.0
  %72 = vmatprep.subr.mxu0 0.0
  %73 = vmatpush1.msra.mxu0 0.0
  %74 = vmatprep.subr.mxu0 0.0
  %75 = vmatpush1.msra.mxu0 %v30
  %76 = vmatprep.subr.mxu0 0.0
  %77 = vmatpush1.msra.mxu0 %v29
  %78 = vmatprep.subr.mxu0 0.0
  %79 = vmatpush1.msra.mxu0 %v28
  %80 = vmatprep.subr.mxu0 0.0
  %81 = vmatpush1.msra.mxu0 %v27
  %82 = vmatprep.subr.mxu0 0.0
  %83 = vmatpush2.msra.mxu0 0.0
  %84 = vmatprep.subr.mxu0 0.0
  %85 = vmatpush2.msra.mxu0 0.0
  %86 = vmatprep.subr.mxu0 0.0
  %87 = vmatpush2.msra.mxu0 0.0
  %88 = vmatprep.subr.mxu0 0.0
  %89 = vmatpush2.msra.mxu0 0.0
  %90 = vmatprep.subr.mxu0 0.0
  %91 = vmatpush2.msra.mxu0 0.0
  %92 = vmatprep.subr.mxu0 0.0
  %93 = vmatpush2.msra.mxu0 0.0
  %94 = vmatprep.subr.mxu0 0.0
  %95 = vmatpush2.msra.mxu0 0.0
  %96 = vmatprep.subr.mxu0 0.0
  %97 = vmatpush2.msra.mxu0 0.0
  %98 = vmatprep.subr.mxu0 0.0
  %99 = vmatpush2.msra.mxu0 0.0
  %100 = vmatprep.subr.mxu0 0.0
  %101 = vmatpush2.msra.mxu0 0.0
  %102 = vmatprep.subr.mxu0 0.0
  %103 = vmatpush2.msra.mxu0 0.0
  %104 = vmatprep.subr.mxu0 0.0
  %105 = vmatpush2.msra.mxu0 0.0
  %106 = vmatprep.subr.mxu0 0.0
  %107 = vmatpush2.msra.mxu0 0.0
  %108 = vmatprep.subr.mxu0 0.0
  %109 = vmatpush2.msra.mxu0 0.0
  %110 = vmatprep.subr.mxu0 0.0
  %111 = vmatpush2.msra.mxu0 0.0
  %112 = vmatprep.subr.mxu0 0.0
  %113 = vmatpush2.msra.mxu0 0.0
  %114 = vmatprep.mubr.f32.mxu0 0.0
  %115 = vmatmul.mubr.f32.gmra.mxu0 %v48
  %v116 = vpop.f32.mrf.mxu0
  %v117 = vadd.f32 %v45, %v116
  %v118 = vpop.f32.mrf.mxu0
  %119 = vdwg.mxu0
  %v120 = vld [vmem:[%s6 + $0x1] sm:$0x1]
  %v121 = vlaneseq
  %v122 = vshrl.u32 %v121, 7
  %v123 = vsub.s32 0, %v122
  %v124 = vrot.slane %v120, %v123
  %v126 = vsel %vm46, %v31, 0
  %128 = vmatprep.subr.mxu0 0.0
  %129 = vmatpush1.msra.mxu0 0.0
  %130 = vmatprep.subr.mxu0 0.0
  %131 = vmatpush1.msra.mxu0 0.0
  %132 = vmatprep.subr.mxu0 0.0
  %133 = vmatpush1.msra.mxu0 0.0
  %134 = vmatprep.subr.mxu0 0.0
  %135 = vmatpush1.msra.mxu0 0.0
  %136 = vmatprep.subr.mxu0 0.0
  %137 = vmatpush1.msra.mxu0 0.0
  %138 = vmatprep.subr.mxu0 0.0
  %139 = vmatpush1.msra.mxu0 0.0
  %140 = vmatprep.subr.mxu0 0.0
  %141 = vmatpush1.msra.mxu0 0.0
  %142 = vmatprep.subr.mxu0 0.0
  %143 = vmatpush1.msra.mxu0 0.0
  %144 = vmatprep.subr.mxu0 0.0
  %145 = vmatpush1.msra.mxu0 0.0
  %146 = vmatprep.subr.mxu0 0.0
  %147 = vmatpush1.msra.mxu0 0.0
  %148 = vmatprep.subr.mxu0 0.0
  %149 = vmatpush1.msra.mxu0 0.0
  %150 = vmatprep.subr.mxu0 0.0
  %151 = vmatpush1.msra.mxu0 0.0
  %152 = vmatprep.subr.mxu0 0.0
  %153 = vmatpush1.msra.mxu0 %v35
  %154 = vmatprep.subr.mxu0 0.0
  %155 = vmatpush1.msra.mxu0 %v34
  %156 = vmatprep.subr.mxu0 0.0
  %157 = vmatpush1.msra.mxu0 %v33
  %158 = vmatprep.subr.mxu0 0.0
  %159 = vmatpush1.msra.mxu0 %v32
  %160 = vmatprep.subr.mxu0 0.0
  %161 = vmatpush2.msra.mxu0 0.0
  %162 = vmatprep.subr.mxu0 0.0
  %163 = vmatpush2.msra.mxu0 0.0
  %164 = vmatprep.subr.mxu0 0.0
  %165 = vmatpush2.msra.mxu0 0.0
  %166 = vmatprep.subr.mxu0 0.0
  %167 = vmatpush2.msra.mxu0 0.0
  %168 = vmatprep.subr.mxu0 0.0
  %169 = vmatpush2.msra.mxu0 0.0
  %170 = vmatprep.subr.mxu0 0.0
  %171 = vmatpush2.msra.mxu0 0.0
  %172 = vmatprep.subr.mxu0 0.0
  %173 = vmatpush2.msra.mxu0 0.0
  %174 = vmatprep.subr.mxu0 0.0
  %175 = vmatpush2.msra.mxu0 0.0
  %176 = vmatprep.subr.mxu0 0.0
  %177 = vmatpush2.msra.mxu0 0.0
  %178 = vmatprep.subr.mxu0 0.0
  %179 = vmatpush2.msra.mxu0 0.0
  %180 = vmatprep.subr.mxu0 0.0
  %181 = vmatpush2.msra.mxu0 0.0
  %182 = vmatprep.subr.mxu0 0.0
  %183 = vmatpush2.msra.mxu0 0.0
  %184 = vmatprep.subr.mxu0 0.0
  %185 = vmatpush2.msra.mxu0 0.0
  %186 = vmatprep.subr.mxu0 0.0
  %187 = vmatpush2.msra.mxu0 0.0
  %188 = vmatprep.subr.mxu0 0.0
  %189 = vmatpush2.msra.mxu0 0.0
  %190 = vmatprep.subr.mxu0 0.0
  %191 = vmatpush2.msra.mxu0 0.0
  %192 = vmatprep.mubr.f32.mxu0 0.0
  %193 = vmatmul.mubr.f32.gmra.mxu0 %v126
  %v194 = vpop.f32.mrf.mxu0
  %v195 = vadd.f32 %v124, %v194
  %v196 = vpop.f32.mrf.mxu0
  %197 = vdwg.mxu0
  %v198 = vld [vmem:[%s6 + $0x2] sm:$0x1]
  %v199 = vlaneseq
  %v200 = vshrl.u32 %v199, 7
  %v201 = vsub.s32 0, %v200
  %v202 = vrot.slane %v198, %v201
  %v204 = vsel %vm46, %v36, 0
  %206 = vmatprep.subr.mxu0 0.0
  %207 = vmatpush1.msra.mxu0 0.0
  %208 = vmatprep.subr.mxu0 0.0
  %209 = vmatpush1.msra.mxu0 0.0
  %210 = vmatprep.subr.mxu0 0.0
  %211 = vmatpush1.msra.mxu0 0.0
  %212 = vmatprep.subr.mxu0 0.0
  %213 = vmatpush1.msra.mxu0 0.0
  %214 = vmatprep.subr.mxu0 0.0
  %215 = vmatpush1.msra.mxu0 0.0
  %216 = vmatprep.subr.mxu0 0.0
  %217 = vmatpush1.msra.mxu0 0.0
  %218 = vmatprep.subr.mxu0 0.0
  %219 = vmatpush1.msra.mxu0 0.0
  %220 = vmatprep.subr.mxu0 0.0
  %221 = vmatpush1.msra.mxu0 0.0
  %222 = vmatprep.subr.mxu0 0.0
  %223 = vmatpush1.msra.mxu0 0.0
  %224 = vmatprep.subr.mxu0 0.0
  %225 = vmatpush1.msra.mxu0 0.0
  %226 = vmatprep.subr.mxu0 0.0
  %227 = vmatpush1.msra.mxu0 0.0
  %228 = vmatprep.subr.mxu0 0.0
  %229 = vmatpush1.msra.mxu0 0.0
  %230 = vmatprep.subr.mxu0 0.0
  %231 = vmatpush1.msra.mxu0 %v40
  %232 = vmatprep.subr.mxu0 0.0
  %233 = vmatpush1.msra.mxu0 %v39
  %234 = vmatprep.subr.mxu0 0.0
  %235 = vmatpush1.msra.mxu0 %v38
  %236 = vmatprep.subr.mxu0 0.0
  %237 = vmatpush1.msra.mxu0 %v37
  %238 = vmatprep.subr.mxu0 0.0
  %239 = vmatpush2.msra.mxu0 0.0
  %240 = vmatprep.subr.mxu0 0.0
  %241 = vmatpush2.msra.mxu0 0.0
  %242 = vmatprep.subr.mxu0 0.0
  %243 = vmatpush2.msra.mxu0 0.0
  %244 = vmatprep.subr.mxu0 0.0
  %245 = vmatpush2.msra.mxu0 0.0
  %246 = vmatprep.subr.mxu0 0.0
  %247 = vmatpush2.msra.mxu0 0.0
  %248 = vmatprep.subr.mxu0 0.0
  %249 = vmatpush2.msra.mxu0 0.0
  %250 = vmatprep.subr.mxu0 0.0
  %251 = vmatpush2.msra.mxu0 0.0
  %252 = vmatprep.subr.mxu0 0.0
  %253 = vmatpush2.msra.mxu0 0.0
  %254 = vmatprep.subr.mxu0 0.0
  %255 = vmatpush2.msra.mxu0 0.0
  %256 = vmatprep.subr.mxu0 0.0
  %257 = vmatpush2.msra.mxu0 0.0
  %258 = vmatprep.subr.mxu0 0.0
  %259 = vmatpush2.msra.mxu0 0.0
  %260 = vmatprep.subr.mxu0 0.0
  %261 = vmatpush2.msra.mxu0 0.0
  %262 = vmatprep.subr.mxu0 0.0
  %263 = vmatpush2.msra.mxu0 0.0
  %264 = vmatprep.subr.mxu0 0.0
  %265 = vmatpush2.msra.mxu0 0.0
  %266 = vmatprep.subr.mxu0 0.0
  %267 = vmatpush2.msra.mxu0 0.0
  %268 = vmatprep.subr.mxu0 0.0
  %269 = vmatpush2.msra.mxu0 0.0
  %270 = vmatprep.mubr.f32.mxu0 0.0
  %271 = vmatmul.mubr.f32.gmra.mxu0 %v204
  %v272 = vpop.f32.mrf.mxu0
  %v273 = vadd.f32 %v202, %v272
  %v274 = vpop.f32.mrf.mxu0
  %275 = vdwg.mxu0
  %277 = vrot.lane.b32.xlu0 %v117, 127
  %v278 = vpop.permute.xlu0 %277
  %v280 = vsub.f32 %v117, %v278
  %282 = vrot.lane.b32.xlu0 %v195, 127
  %v283 = vpop.permute.xlu0 %282
  %v285 = vsub.f32 %v195, %v283
  %287 = vrot.lane.b32.xlu0 %v273, 127
  %v288 = vpop.permute.xlu0 %287
  %v290 = vsub.f32 %v273, %v288
  %v291 = vsub.f32 0.0, %v280
  %v292 = vmul.f32 %v291, 1.442695
  %v293 = vpow.pop %v292
  %v294 = vadd.f32 %v293, 1.0
  %v295 = vrcp.pop %v294
  %v296 = vsub.f32 0.0, %v285
  %v297 = vmul.f32 %v296, 1.442695
  %v298 = vpow.pop %v297
  %v299 = vadd.f32 %v298, 1.0
  %v300 = vrcp.pop %v299
  %v301 = vadd.f32 %v295, %v300
  %v302 = vsub.f32 0.0, %v290
  %v303 = vmul.f32 %v302, 1.442695
  %v304 = vpow.pop %v303
  %v305 = vadd.f32 %v304, 1.0
  %v306 = vrcp.pop %v305
  %v307 = vadd.f32 %v301, %v306
  %v308 = vmul.f32 %v307, 0.33333334
  %v309 = vlaneseq
  %v310 = vand.u32 %v309, 127
  %vm311 = vcmp.eq.s32.totalorder %v310, 0
  %v312 = vsub.f32 1.0, %v308
  %314 = vset.pattern.permute.xlu0 0
  %315 = vperm.xlu0 %314, %v308
  %v316 = vpop.permute.xlu0 %315
  %319 = vset.pattern.permute.xlu0 0
  %320 = vperm.xlu0 %319, %v312
  %v321 = vpop.permute.xlu0 %320
  %v323 = vsel %vm311, %v316, %v321
  %vm324 = vcmask 15360
  %325 = vst.msk [vmem:[%s7] sm:$0xff] %vm324, %v323
  // Predicated region
  $region30: #{tpu_custom_call.1} parent=0 // pred_check
    _
  $region31: #{tpu_custom_call.1} parent=0 // pred_check_branch
    %327 = sbr.rel (0) target = $region33
  $region32: #{tpu_custom_call.1} parent=0 // pred_region
    _
  $region33: #{tpu_custom_call.1} parent=0 // pred_fallthru
    _
  // Predicated region
  $region34: #{tpu_custom_call.1} parent=0 // pred_check
    _
  $region35: #{tpu_custom_call.1} parent=0 // pred_check_branch
    %329 = sbr.rel (0) target = $region37
  $region36: #{tpu_custom_call.1} parent=0 // pred_region
    _
  $region37: #{tpu_custom_call.1} parent=0 // pred_fallthru
    _

</llo_original>
